<compile_context>
chip_gen: v7x
topology: tpu7x:2x2x1
jax: 0.10.0
libtpu: 0.0.40
codegen_flags: <defaults>
</compile_context>

<pallas_src>
import jax
import jax.numpy as jnp
from jax.experimental import pallas as pl
from jax.experimental.pallas import tpu as pltpu


def fused_conv_block_kernel(x_ref, bw1_ref, b1_ref, bw2_ref, b2_ref, o_ref,
                            xpad1_ref, xpad2_ref):
    """conv3x3+ReLU -> conv3x3+ReLU for one image, entirely in VMEM.

    x_ref   : (1, H, W*Cin)          bf16  lane-packed NHWC input
    bw1_ref : (3, W*Cin,  W*Cmid)    bf16  banded conv1 weights (one per ky)
    b1_ref  : (1, W*Cmid)            f32   bias tiled across W
    bw2_ref : (3, W*Cmid, W*Cout)    bf16
    b2_ref  : (1, W*Cout)            f32
    o_ref   : (1, H, W*Cout)         f32   lane-dense output block
    xpad1   : VMEM (H+2, W*Cin)      f32   row-padded conv1 input
    xpad2   : VMEM (H+2, W*Cmid)     f32   row-padded conv2 input
    """
    H = x_ref.shape[1]

    def conv3x3_relu(xpad_ref, bw_ref, b_ref):
        n_lanes = bw_ref.shape[2]
        # Bias pre-loaded into the accumulator (saves a trailing vadd).
        acc = jnp.broadcast_to(b_ref[...], (H, n_lanes)).astype(jnp.float32)
        for ky in range(3):                     # 3 row-shifted MXU matmuls
            a = xpad_ref[ky:ky + H, :].astype(jnp.bfloat16)
            acc = acc + jnp.dot(a, bw_ref[ky],
                                preferred_element_type=jnp.float32)
        return jnp.maximum(acc, 0.0)            # ReLU in f32

    w_cin = xpad1_ref.shape[1]
    w_cmid = xpad2_ref.shape[1]
    zrow1 = jnp.zeros((1, w_cin), jnp.float32)
    zrow2 = jnp.zeros((1, w_cmid), jnp.float32)

    # ---- conv1: only the 2 halo rows are zeroed; interior overwritten ------
    xpad1_ref[0:1, :] = zrow1
    xpad1_ref[H + 1:H + 2, :] = zrow1
    xpad1_ref[1:H + 1, :] = x_ref[0].astype(jnp.float32)
    h1 = conv3x3_relu(xpad1_ref, bw1_ref, b1_ref)

    # ---- conv2: intermediate activation never leaves VMEM -----------------
    xpad2_ref[0:1, :] = zrow2
    xpad2_ref[H + 1:H + 2, :] = zrow2
    xpad2_ref[1:H + 1, :] = h1
    h2 = conv3x3_relu(xpad2_ref, bw2_ref, b2_ref)

    o_ref[...] = h2.astype(o_ref.dtype)[None]


def _band_weights(w_hwio, W):
    """HWIO (3, 3, Cin, Cout) -> (3, W*Cin, W*Cout) block-Toeplitz slabs.

    band[ky, xin*Cin + ci, xo*Cout + co] = w[ky, xin - xo + 1, ci, co]
    (zero when xin - xo + 1 is outside [0, 3)), so that
        out[y, xo*Cout + co] = sum_ky  xpad[y + ky, :] @ band[ky]
    reproduces a stride-1 SAME 3x3 conv on the lane-packed (H, W*C) layout.
    Width padding is implicit (out-of-range taps multiply nothing); only the
    height halo needs explicit zero rows in the VMEM scratch.
    """
    kh, kw, cin, cout = w_hwio.shape
    xin = jnp.arange(W)
    xo = jnp.arange(W)
    dx = xin[:, None] - xo[None, :] + (kw // 2)          # (W, W)
    valid = (dx >= 0) & (dx < kw)
    dx_c = jnp.clip(dx, 0, kw - 1)
    wg = w_hwio[:, dx_c, :, :]                           # (kh, W, W, Cin, Cout)
    wg = wg * valid[None, :, :, None, None]
    wg = jnp.transpose(wg, (0, 1, 3, 2, 4))              # (kh, Win, Cin, Wout, Cout)
    return wg.reshape(kh, W * cin, W * cout)


def conv_block_pallas(x_nhwc, params):
    """Fused ConvBlock on NHWC input; returns NHWC output (f32)."""
    (w1, b1), (w2, b2) = params
    N, H, W, Cin = x_nhwc.shape
    Cmid = w1.shape[-1]
    Cout = w2.shape[-1]

    # bf16 over HBM / on the MXU; biases stay f32.
    x_packed = x_nhwc.reshape(N, H, W * Cin).astype(jnp.bfloat16)
    bw1 = _band_weights(w1, W).astype(jnp.bfloat16)      # (3, W*Cin,  W*Cmid)
    bw2 = _band_weights(w2, W).astype(jnp.bfloat16)      # (3, W*Cmid, W*Cout)
    b1p = jnp.tile(b1, W).reshape(1, W * Cmid).astype(jnp.float32)
    b2p = jnp.tile(b2, W).reshape(1, W * Cout).astype(jnp.float32)

    out = pl.pallas_call(
        fused_conv_block_kernel,
        out_shape=jax.ShapeDtypeStruct((N, H, W * Cout), jnp.float32),
        grid_spec=pltpu.PrefetchScalarGridSpec(
            num_scalar_prefetch=0,
            grid=(N,),
            in_specs=[
                pl.BlockSpec((1, H, W * Cin), lambda n: (n, 0, 0)),
                pl.BlockSpec(bw1.shape, lambda n: (0, 0, 0)),
                pl.BlockSpec((1, W * Cmid), lambda n: (0, 0)),
                pl.BlockSpec(bw2.shape, lambda n: (0, 0, 0)),
                pl.BlockSpec((1, W * Cout), lambda n: (0, 0)),
            ],
            out_specs=pl.BlockSpec((1, H, W * Cout), lambda n: (n, 0, 0)),
            scratch_shapes=[
                pltpu.VMEM((H + 2, W * Cin), jnp.float32),
                pltpu.VMEM((H + 2, W * Cmid), jnp.float32),
            ],
        ),
        compiler_params=pltpu.CompilerParams(
            dimension_semantics=("parallel",),
            vmem_limit_bytes=32 * 1024 * 1024,
        ),
    )(x_packed, bw1, b1p, bw2, b2p)

    return out.reshape(N, H, W, Cout)


@jax.jit
def conv_block_forward(x_nchw, params):
    """ConvBlock.forward: NCHW in / NCHW out (transpose once per block; a
    full U-Net would keep the lane-packed NHWC layout end-to-end)."""
    x = jnp.transpose(x_nchw, (0, 2, 3, 1))
    y = conv_block_pallas(x, params)
    return jnp.transpose(y, (0, 3, 1, 2))


def init_conv_params(key, cin, cout):
    """Deterministic init matching PyTorch Conv2d's default uniform scheme."""
    kw, kb = jax.random.split(key)
    fan_in = cin * 3 * 3
    bound = 1.0 / jnp.sqrt(fan_in)
    w = jax.random.uniform(kw, (3, 3, cin, cout), jnp.float32, -bound, bound)
    b = jax.random.uniform(kb, (cout,), jnp.float32, -bound, bound)
    return w, b


def reference_forward(x_nchw, params):
    """Pure-JAX reference with the same bf16 operand rounding as the kernel."""
    (w1, b1), (w2, b2) = params
    r = lambda v: v.astype(jnp.bfloat16).astype(jnp.float32)
    dn = ("NCHW", "HWIO", "NCHW")
    hi = jax.lax.Precision.HIGHEST
    y = jax.lax.conv_general_dilated(r(x_nchw), r(w1), (1, 1), "SAME",
                                     dimension_numbers=dn, precision=hi)
    y = jnp.maximum(y + b1[None, :, None, None], 0.0)
    y = jax.lax.conv_general_dilated(r(y), r(w2), (1, 1), "SAME",
                                     dimension_numbers=dn, precision=hi)
    y = jnp.maximum(y + b2[None, :, None, None], 0.0)
    return y


if __name__ == "__main__":
    key = jax.random.PRNGKey(0)
    kx, k1, k2 = jax.random.split(key, 3)

    N, Cin, Cout, H, W = 2, 4, 8, 16, 16
    x = jax.random.normal(kx, (N, Cin, H, W), jnp.float32)
    params = (init_conv_params(k1, Cin, Cout),
              init_conv_params(k2, Cout, Cout))

    out = jax.block_until_ready(conv_block_forward(x, params))
    ref = reference_forward(x, params)

    assert out.shape == (N, Cout, H, W)
    assert jnp.allclose(out, ref, atol=1e-2, rtol=1e-2), (
        float(jnp.max(jnp.abs(out - ref))))
    print("KERNEL_OK")
</pallas_src>

<mosaic_0001>
module attributes {stable_mosaic.version = 11 : i64} {
  func.func @fused_conv_block_kernel(%arg0: i32, %arg1: memref<1x16x64xbf16, #tpu.memory_space<vmem>>, %arg2: memref<3x64x128xbf16, #tpu.memory_space<vmem>>, %arg3: memref<1x128xf32, #tpu.memory_space<vmem>>, %arg4: memref<3x128x128xbf16, #tpu.memory_space<vmem>>, %arg5: memref<1x128xf32, #tpu.memory_space<vmem>>, %arg6: memref<1x16x128xf32, #tpu.memory_space<vmem>>, %arg7: memref<18x64xf32, #tpu.memory_space<vmem>>, %arg8: memref<18x128xf32, #tpu.memory_space<vmem>>) attributes {dimension_semantics = [#tpu.dimension_semantics<parallel>], iteration_bounds = array<i64: 2>, scalar_prefetch = 0 : i64, scratch_operands = 2 : i64, tpu.core_type = #tpu.core_type<tc>, window_params = [{transform_indices = @transform_0, window_bounds = array<i64: 1, 16, 64>}, {pipeline_mode = #tpu.pipeline_mode<synchronous>, transform_indices = @transform_1, window_bounds = array<i64: 3, 64, 128>}, {pipeline_mode = #tpu.pipeline_mode<synchronous>, transform_indices = @transform_2, window_bounds = array<i64: 1, 128>}, {pipeline_mode = #tpu.pipeline_mode<synchronous>, transform_indices = @transform_3, window_bounds = array<i64: 3, 128, 128>}, {pipeline_mode = #tpu.pipeline_mode<synchronous>, transform_indices = @transform_4, window_bounds = array<i64: 1, 128>}, {transform_indices = @transform_5, window_bounds = array<i64: 1, 16, 128>}]} {
    %cst = arith.constant 0.000000e+00 : f32
    %0 = vector.broadcast %cst : f32 to vector<1x64xf32>
    %cst_0 = arith.constant 0.000000e+00 : f32
    %1 = vector.broadcast %cst_0 : f32 to vector<1x128xf32>
    %c0 = arith.constant 0 : index
    %c0_1 = arith.constant 0 : index
    %2 = vector.load %arg7[%c0, %c0_1] : memref<18x64xf32, #tpu.memory_space<vmem>>, vector<1x64xf32>
    tpu.vector_store %arg7[%c0, %c0_1], %0 {strides = array<i32>} : memref<18x64xf32, #tpu.memory_space<vmem>>, vector<1x64xf32>,
    %c17 = arith.constant 17 : index
    %c0_2 = arith.constant 0 : index
    %3 = vector.load %arg7[%c17, %c0_2] : memref<18x64xf32, #tpu.memory_space<vmem>>, vector<1x64xf32>
    tpu.vector_store %arg7[%c17, %c0_2], %0 {strides = array<i32>} : memref<18x64xf32, #tpu.memory_space<vmem>>, vector<1x64xf32>,
    %c0_3 = arith.constant 0 : index
    %c0_4 = arith.constant 0 : index
    %c0_5 = arith.constant 0 : index
    %4 = vector.load %arg1[%c0_3, %c0_4, %c0_5] : memref<1x16x64xbf16, #tpu.memory_space<vmem>>, vector<1x16x64xbf16>
    %5 = vector.shape_cast %4 : vector<1x16x64xbf16> to vector<16x64xbf16>
    %6 = arith.extf %5 : vector<16x64xbf16> to vector<16x64xf32>
    %c1 = arith.constant 1 : index
    %c0_6 = arith.constant 0 : index
    %7 = vector.load %arg7[%c1, %c0_6] : memref<18x64xf32, #tpu.memory_space<vmem>>, vector<16x64xf32>
    tpu.vector_store %arg7[%c1, %c0_6], %6 {strides = array<i32>} : memref<18x64xf32, #tpu.memory_space<vmem>>, vector<16x64xf32>,
    %c0_7 = arith.constant 0 : index
    %c0_8 = arith.constant 0 : index
    %8 = vector.load %arg3[%c0_7, %c0_8] : memref<1x128xf32, #tpu.memory_space<vmem>>, vector<1x128xf32>
    %9 = vector.shape_cast %8 : vector<1x128xf32> to vector<1x128xf32>
    %10 = vector.broadcast %9 : vector<1x128xf32> to vector<16x128xf32>
    %c0_9 = arith.constant 0 : index
    %c0_10 = arith.constant 0 : index
    %11 = vector.load %arg7[%c0_9, %c0_10] : memref<18x64xf32, #tpu.memory_space<vmem>>, vector<16x64xf32>
    %12 = arith.truncf %11 : vector<16x64xf32> to vector<16x64xbf16>
    %c0_11 = arith.constant 0 : index
    %c0_12 = arith.constant 0 : index
    %c0_13 = arith.constant 0 : index
    %13 = vector.load %arg2[%c0_11, %c0_12, %c0_13] : memref<3x64x128xbf16, #tpu.memory_space<vmem>>, vector<1x64x128xbf16>
    %14 = vector.shape_cast %13 : vector<1x64x128xbf16> to vector<64x128xbf16>
    %cst_14 = arith.constant dense<0.000000e+00> : vector<16x128xf32>
    %15 = tpu.matmul %12, %14, %cst_14 {dimension_numbers = #tpu.dot_dimension_numbers<[1], [0], [0], [1], [0, 0, 1, 1], [], []>} : vector<16x64xbf16>, vector<64x128xbf16>, vector<16x128xf32> -> vector<16x128xf32>
    %16 = arith.addf %10, %15 : vector<16x128xf32>
    %c1_15 = arith.constant 1 : index
    %c0_16 = arith.constant 0 : index
    %17 = vector.load %arg7[%c1_15, %c0_16] : memref<18x64xf32, #tpu.memory_space<vmem>>, vector<16x64xf32>
    %18 = arith.truncf %17 : vector<16x64xf32> to vector<16x64xbf16>
    %c1_17 = arith.constant 1 : index
    %c0_18 = arith.constant 0 : index
    %c0_19 = arith.constant 0 : index
    %19 = vector.load %arg2[%c1_17, %c0_18, %c0_19] : memref<3x64x128xbf16, #tpu.memory_space<vmem>>, vector<1x64x128xbf16>
    %20 = vector.shape_cast %19 : vector<1x64x128xbf16> to vector<64x128xbf16>
    %cst_20 = arith.constant dense<0.000000e+00> : vector<16x128xf32>
    %21 = tpu.matmul %18, %20, %cst_20 {dimension_numbers = #tpu.dot_dimension_numbers<[1], [0], [0], [1], [0, 0, 1, 1], [], []>} : vector<16x64xbf16>, vector<64x128xbf16>, vector<16x128xf32> -> vector<16x128xf32>
    %22 = arith.addf %16, %21 : vector<16x128xf32>
    %c2 = arith.constant 2 : index
    %c0_21 = arith.constant 0 : index
    %23 = vector.load %arg7[%c2, %c0_21] : memref<18x64xf32, #tpu.memory_space<vmem>>, vector<16x64xf32>
    %24 = arith.truncf %23 : vector<16x64xf32> to vector<16x64xbf16>
    %c2_22 = arith.constant 2 : index
    %c0_23 = arith.constant 0 : index
    %c0_24 = arith.constant 0 : index
    %25 = vector.load %arg2[%c2_22, %c0_23, %c0_24] : memref<3x64x128xbf16, #tpu.memory_space<vmem>>, vector<1x64x128xbf16>
    %26 = vector.shape_cast %25 : vector<1x64x128xbf16> to vector<64x128xbf16>
    %cst_25 = arith.constant dense<0.000000e+00> : vector<16x128xf32>
    %27 = tpu.matmul %24, %26, %cst_25 {dimension_numbers = #tpu.dot_dimension_numbers<[1], [0], [0], [1], [0, 0, 1, 1], [], []>} : vector<16x64xbf16>, vector<64x128xbf16>, vector<16x128xf32> -> vector<16x128xf32>
    %28 = arith.addf %22, %27 : vector<16x128xf32>
    %cst_26 = arith.constant 0.000000e+00 : f32
    %29 = vector.broadcast %cst_26 : f32 to vector<16x128xf32>
    %30 = arith.maximumf %28, %29 : vector<16x128xf32>
    %c0_27 = arith.constant 0 : index
    %c0_28 = arith.constant 0 : index
    %31 = vector.load %arg8[%c0_27, %c0_28] : memref<18x128xf32, #tpu.memory_space<vmem>>, vector<1x128xf32>
    tpu.vector_store %arg8[%c0_27, %c0_28], %1 {strides = array<i32>} : memref<18x128xf32, #tpu.memory_space<vmem>>, vector<1x128xf32>,
    %c17_29 = arith.constant 17 : index
    %c0_30 = arith.constant 0 : index
    %32 = vector.load %arg8[%c17_29, %c0_30] : memref<18x128xf32, #tpu.memory_space<vmem>>, vector<1x128xf32>
    tpu.vector_store %arg8[%c17_29, %c0_30], %1 {strides = array<i32>} : memref<18x128xf32, #tpu.memory_space<vmem>>, vector<1x128xf32>,
    %c1_31 = arith.constant 1 : index
    %c0_32 = arith.constant 0 : index
    %33 = vector.load %arg8[%c1_31, %c0_32] : memref<18x128xf32, #tpu.memory_space<vmem>>, vector<16x128xf32>
    tpu.vector_store %arg8[%c1_31, %c0_32], %30 {strides = array<i32>} : memref<18x128xf32, #tpu.memory_space<vmem>>, vector<16x128xf32>,
    %c0_33 = arith.constant 0 : index
    %c0_34 = arith.constant 0 : index
    %34 = vector.load %arg5[%c0_33, %c0_34] : memref<1x128xf32, #tpu.memory_space<vmem>>, vector<1x128xf32>
    %35 = vector.shape_cast %34 : vector<1x128xf32> to vector<1x128xf32>
    %36 = vector.broadcast %35 : vector<1x128xf32> to vector<16x128xf32>
    %c0_35 = arith.constant 0 : index
    %c0_36 = arith.constant 0 : index
    %37 = vector.load %arg8[%c0_35, %c0_36] : memref<18x128xf32, #tpu.memory_space<vmem>>, vector<16x128xf32>
    %38 = arith.truncf %37 : vector<16x128xf32> to vector<16x128xbf16>
    %c0_37 = arith.constant 0 : index
    %c0_38 = arith.constant 0 : index
    %c0_39 = arith.constant 0 : index
    %39 = vector.load %arg4[%c0_37, %c0_38, %c0_39] : memref<3x128x128xbf16, #tpu.memory_space<vmem>>, vector<1x128x128xbf16>
    %40 = vector.shape_cast %39 : vector<1x128x128xbf16> to vector<128x128xbf16>
    %cst_40 = arith.constant dense<0.000000e+00> : vector<16x128xf32>
    %41 = tpu.matmul %38, %40, %cst_40 {dimension_numbers = #tpu.dot_dimension_numbers<[1], [0], [0], [1], [0, 0, 1, 1], [], []>} : vector<16x128xbf16>, vector<128x128xbf16>, vector<16x128xf32> -> vector<16x128xf32>
    %42 = arith.addf %36, %41 : vector<16x128xf32>
    %c1_41 = arith.constant 1 : index
    %c0_42 = arith.constant 0 : index
    %43 = vector.load %arg8[%c1_41, %c0_42] : memref<18x128xf32, #tpu.memory_space<vmem>>, vector<16x128xf32>
    %44 = arith.truncf %43 : vector<16x128xf32> to vector<16x128xbf16>
    %c1_43 = arith.constant 1 : index
    %c0_44 = arith.constant 0 : index
    %c0_45 = arith.constant 0 : index
    %45 = vector.load %arg4[%c1_43, %c0_44, %c0_45] : memref<3x128x128xbf16, #tpu.memory_space<vmem>>, vector<1x128x128xbf16>
    %46 = vector.shape_cast %45 : vector<1x128x128xbf16> to vector<128x128xbf16>
    %cst_46 = arith.constant dense<0.000000e+00> : vector<16x128xf32>
    %47 = tpu.matmul %44, %46, %cst_46 {dimension_numbers = #tpu.dot_dimension_numbers<[1], [0], [0], [1], [0, 0, 1, 1], [], []>} : vector<16x128xbf16>, vector<128x128xbf16>, vector<16x128xf32> -> vector<16x128xf32>
    %48 = arith.addf %42, %47 : vector<16x128xf32>
    %c2_47 = arith.constant 2 : index
    %c0_48 = arith.constant 0 : index
    %49 = vector.load %arg8[%c2_47, %c0_48] : memref<18x128xf32, #tpu.memory_space<vmem>>, vector<16x128xf32>
    %50 = arith.truncf %49 : vector<16x128xf32> to vector<16x128xbf16>
    %c2_49 = arith.constant 2 : index
    %c0_50 = arith.constant 0 : index
    %c0_51 = arith.constant 0 : index
    %51 = vector.load %arg4[%c2_49, %c0_50, %c0_51] : memref<3x128x128xbf16, #tpu.memory_space<vmem>>, vector<1x128x128xbf16>
    %52 = vector.shape_cast %51 : vector<1x128x128xbf16> to vector<128x128xbf16>
    %cst_52 = arith.constant dense<0.000000e+00> : vector<16x128xf32>
    %53 = tpu.matmul %50, %52, %cst_52 {dimension_numbers = #tpu.dot_dimension_numbers<[1], [0], [0], [1], [0, 0, 1, 1], [], []>} : vector<16x128xbf16>, vector<128x128xbf16>, vector<16x128xf32> -> vector<16x128xf32>
    %54 = arith.addf %48, %53 : vector<16x128xf32>
    %cst_53 = arith.constant 0.000000e+00 : f32
    %55 = vector.broadcast %cst_53 : f32 to vector<16x128xf32>
    %56 = arith.maximumf %54, %55 : vector<16x128xf32>
    %57 = vector.shape_cast %56 : vector<16x128xf32> to vector<1x16x128xf32>
    %c0_54 = arith.constant 0 : index
    %c0_55 = arith.constant 0 : index
    %c0_56 = arith.constant 0 : index
    %58 = vector.load %arg6[%c0_54, %c0_55, %c0_56] : memref<1x16x128xf32, #tpu.memory_space<vmem>>, vector<1x16x128xf32>
    tpu.vector_store %arg6[%c0_54, %c0_55, %c0_56], %57 {strides = array<i32>} : memref<1x16x128xf32, #tpu.memory_space<vmem>>, vector<1x16x128xf32>,
    return
  }
  func.func @transform_0(%arg0: i32) -> (i32, i32, i32) {
    %c0_i32 = arith.constant 0 : i32
    %c0_i32_0 = arith.constant 0 : i32
    %c0_i32_1 = arith.constant 0 : i32
    return %arg0, %c0_i32, %c0_i32_0 : i32, i32, i32
  }
  func.func @transform_1(%arg0: i32) -> (i32, i32, i32) {
    %c0_i32 = arith.constant 0 : i32
    %c0_i32_0 = arith.constant 0 : i32
    %c0_i32_1 = arith.constant 0 : i32
    %c0_i32_2 = arith.constant 0 : i32
    return %c0_i32, %c0_i32_0, %c0_i32_1 : i32, i32, i32
  }
  func.func @transform_2(%arg0: i32) -> (i32, i32) {
    %c0_i32 = arith.constant 0 : i32
    %c0_i32_0 = arith.constant 0 : i32
    %c0_i32_1 = arith.constant 0 : i32
    return %c0_i32, %c0_i32_0 : i32, i32
  }
  func.func @transform_3(%arg0: i32) -> (i32, i32, i32) {
    %c0_i32 = arith.constant 0 : i32
    %c0_i32_0 = arith.constant 0 : i32
    %c0_i32_1 = arith.constant 0 : i32
    %c0_i32_2 = arith.constant 0 : i32
    return %c0_i32, %c0_i32_0, %c0_i32_1 : i32, i32, i32
  }
  func.func @transform_4(%arg0: i32) -> (i32, i32) {
    %c0_i32 = arith.constant 0 : i32
    %c0_i32_0 = arith.constant 0 : i32
    %c0_i32_1 = arith.constant 0 : i32
    return %c0_i32, %c0_i32_0 : i32, i32
  }
  func.func @transform_5(%arg0: i32) -> (i32, i32, i32) {
    %c0_i32 = arith.constant 0 : i32
    %c0_i32_0 = arith.constant 0 : i32
    %c0_i32_1 = arith.constant 0 : i32
    return %arg0, %c0_i32, %c0_i32_0 : i32, i32, i32
  }
}

</mosaic_0001>

<llo_original>
// kernel: tile.13
$region0: #{tile.13}
  #allocation0 [shape = 's32[1]{0}', space=sflag, size = 0x4, scoped, tag = 'scoped memory for tile.13']
  %s0 = inlined_call_operand.vmem [shape: f32[8], index: 0, kind: input, shape index: {}]
  %s1 = inlined_call_operand.vmem [shape: f32[16,8], index: 1, kind: output, shape index: {}]
  // Predicated region
  $region2: #{tile.13} parent=0 // pred_check
    _
  $region3: #{tile.13} parent=0 // pred_check_branch
    %3 = sbr.rel (0) target = $region5
  $region4: #{tile.13} parent=0 // pred_region
    _
  $region5: #{tile.13} parent=0 // pred_fallthru
    _
  %v4 = vld [vmem:[%s0] ss:$0 sm:$0xff]
  %5 = vst [vmem:[%s1] sm:$0xff] %v4
  %s6 = scalar_lea.vmem %s1, 8
  %7 = vst [vmem:[%s6] sm:$0xff] %v4

// kernel: tile.14
$region0: #{tile.14}
  %s0 = inlined_call_operand.vmem [shape: f32[16,8], index: 0, kind: input, shape index: {}]
  %s1 = inlined_call_operand.vmem [shape: f32[1,128], index: 1, kind: output, shape index: {}]
  $region1: #{tile.14} parent=0
    #allocation0 [shape = 'u8[4096]{0}', space=vmem, size = 0x1000, scoped, tag = 'scoped mem for output reshape']
    %v2 = vld [vmem:[%s0] sm:$0x1]
    %vm3 = vcmask 64512
    %4 = vst.msk [vmem:[#allocation0] sm:$0x1] %vm3, %v2
    %s5 = scalar_lea.vmem %s0, 15
    %v6 = vld [vmem:[%s5] sm:$0x1]
    %7 = vrot.lane.b32.xlu0 %v6, 120
    %v8 = vpop.permute.xlu0 %7
    %vm9 = vcmask 1048512
    %10 = vst.msk [vmem:[#allocation0] sm:$0x1] %vm9, %v8
    %s11 = scalar_lea.vmem %s0, 14
    %v12 = vld [vmem:[%s11] sm:$0x1]
    %13 = vrot.lane.b32.xlu0 %v12, 112
    %v14 = vpop.permute.xlu0 %13
    %vm15 = vcmask 982912
    %16 = vst.msk [vmem:[#allocation0] sm:$0x1] %vm15, %v14
    %s17 = scalar_lea.vmem %s0, 13
    %v18 = vld [vmem:[%s17] sm:$0x1]
    %19 = vrot.lane.b32.xlu0 %v18, 104
    %v20 = vpop.permute.xlu0 %19
    %vm21 = vcmask 917312
    %22 = vst.msk [vmem:[#allocation0] sm:$0x1] %vm21, %v20
    %s23 = scalar_lea.vmem %s0, 12
    %v24 = vld [vmem:[%s23] sm:$0x1]
    %25 = vrot.lane.b32.xlu0 %v24, 96
    %v26 = vpop.permute.xlu0 %25
    %vm27 = vcmask 851712
    %28 = vst.msk [vmem:[#allocation0] sm:$0x1] %vm27, %v26
    %s29 = scalar_lea.vmem %s0, 11
    %v30 = vld [vmem:[%s29] sm:$0x1]
    %31 = vrot.lane.b32.xlu0 %v30, 88
    %v32 = vpop.permute.xlu0 %31
    %vm33 = vcmask 786112
    %34 = vst.msk [vmem:[#allocation0] sm:$0x1] %vm33, %v32
    %s35 = scalar_lea.vmem %s0, 10
    %v36 = vld [vmem:[%s35] sm:$0x1]
    %37 = vrot.lane.b32.xlu0 %v36, 80
    %v38 = vpop.permute.xlu0 %37
    %vm39 = vcmask 720512
    %40 = vst.msk [vmem:[#allocation0] sm:$0x1] %vm39, %v38
    %s41 = scalar_lea.vmem %s0, 9
    %v42 = vld [vmem:[%s41] sm:$0x1]
    %43 = vrot.lane.b32.xlu0 %v42, 72
    %v44 = vpop.permute.xlu0 %43
    %vm45 = vcmask 654912
    %46 = vst.msk [vmem:[#allocation0] sm:$0x1] %vm45, %v44
    %s47 = scalar_lea.vmem %s0, 8
    %v48 = vld [vmem:[%s47] sm:$0x1]
    %49 = vrot.lane.b32.xlu0 %v48, 64
    %v50 = vpop.permute.xlu0 %49
    %vm51 = vcmask 589312
    %52 = vst.msk [vmem:[#allocation0] sm:$0x1] %vm51, %v50
    %s53 = scalar_lea.vmem %s0, 7
    %v54 = vld [vmem:[%s53] sm:$0x1]
    %55 = vrot.lane.b32.xlu0 %v54, 56
    %v56 = vpop.permute.xlu0 %55
    %vm57 = vcmask 523712
    %58 = vst.msk [vmem:[#allocation0] sm:$0x1] %vm57, %v56
    %s59 = scalar_lea.vmem %s0, 6
    %v60 = vld [vmem:[%s59] sm:$0x1]
    %61 = vrot.lane.b32.xlu0 %v60, 48
    %v62 = vpop.permute.xlu0 %61
    %vm63 = vcmask 458112
    %64 = vst.msk [vmem:[#allocation0] sm:$0x1] %vm63, %v62
    %s65 = scalar_lea.vmem %s0, 5
    %v66 = vld [vmem:[%s65] sm:$0x1]
    %67 = vrot.lane.b32.xlu0 %v66, 40
    %v68 = vpop.permute.xlu0 %67
    %vm69 = vcmask 392512
    %70 = vst.msk [vmem:[#allocation0] sm:$0x1] %vm69, %v68
    %s71 = scalar_lea.vmem %s0, 4
    %v72 = vld [vmem:[%s71] sm:$0x1]
    %73 = vrot.lane.b32.xlu0 %v72, 32
    %v74 = vpop.permute.xlu0 %73
    %vm75 = vcmask 326912
    %76 = vst.msk [vmem:[#allocation0] sm:$0x1] %vm75, %v74
    %s77 = scalar_lea.vmem %s0, 3
    %v78 = vld [vmem:[%s77] sm:$0x1]
    %79 = vrot.lane.b32.xlu0 %v78, 24
    %v80 = vpop.permute.xlu0 %79
    %vm81 = vcmask 261312
    %82 = vst.msk [vmem:[#allocation0] sm:$0x1] %vm81, %v80
    %s83 = scalar_lea.vmem %s0, 2
    %v84 = vld [vmem:[%s83] sm:$0x1]
    %85 = vrot.lane.b32.xlu0 %v84, 16
    %v86 = vpop.permute.xlu0 %85
    %vm87 = vcmask 195712
    %88 = vst.msk [vmem:[#allocation0] sm:$0x1] %vm87, %v86
    %s89 = scalar_lea.vmem %s0, 1
    %v90 = vld [vmem:[%s89] sm:$0x1]
    %91 = vrot.lane.b32.xlu0 %v90, 8
    %v92 = vpop.permute.xlu0 %91
    %vm93 = vcmask 130112
    %94 = vst.msk [vmem:[#allocation0] sm:$0x1] %vm93, %v92
    %s96 = sshllo.u32 0, 1
    %v98 = vld [vmem:[#allocation0] sm:%s96]
    %s99 = sshllo.u32 0, 1
    %100 = vst [vmem:[%s1] sm:%s99] %v98

// kernel: conv_block_forward.1
$region0: #{conv_block_forward.1}
  #allocation0 [shape = 'u32[]', space=smem, size = 0x4, offset = 0x4, fixed_abs, tag = 'smem constant byte address 0x4 - core index']
  #allocation1 [shape = 'u32[144,128]{1,0:T(1,128)}', space=vmem, size = 0x12000, scoped, tag = 'internal scratch']
  #allocation2 [shape = 'f32[18,64]{1,0:T(8,128)}', space=vmem, size = 0x3000, scoped, tag = 'scratch operand']
  #allocation3 [shape = 'f32[18,128]{1,0:T(8,128)}', space=vmem, size = 0x3000, scoped, tag = 'scratch operand']
  %s0 = inlined_call_operand.vmem [shape: bf16[2,16,64], index: 0, kind: input, shape index: {}]
  %s1 = inlined_call_operand.vmem [shape: bf16[3,64,128], index: 1, kind: input, shape index: {}]
  %s2 = inlined_call_operand.vmem [shape: f32[1,128], index: 2, kind: input, shape index: {}]
  %s3 = inlined_call_operand.vmem [shape: bf16[3,128,128], index: 3, kind: input, shape index: {}]
  %s4 = inlined_call_operand.vmem [shape: f32[1,128], index: 4, kind: input, shape index: {}]
  %s5 = inlined_call_operand.vmem [shape: f32[2,16,128], index: 5, kind: output, shape index: {}]
  %s6 = sld [smem:[#allocation0]]
  $region53: #{conv_block_forward.1} parent=0
    _
  %s8 = ssub.s32 1, %s6
  %s9 = scalar_select 0, %s8, %s6
  loop: start=0, step=1, limit=4
  $region2: #{conv_block_forward.1} parent=0 // loop_pre_header
    _
  $region3: #{conv_block_forward.1} parent=0 // loop_header
    %s11 = sphi 0, %s15
    %p12 = scmp.ge.s32.totalorder %s11, 4
    %s21 = sphi 0, %s23
    %s24 = sphi 0, %s21
    %s25 = sphi 0, %s24
    %s41 = sphi 0, %s25
    %s45 = sphi 0, %s45
    %s47 = sphi 0, %s45
    %s48 = sphi 0, %s47
    %s62 = sphi 0, %s48
    %s66 = sphi 0, %s66
    %s68 = sphi 0, %s66
    %s69 = sphi 0, %s68
    %s83 = sphi 0, %s69
    %s87 = sphi 0, %s87
    %s89 = sphi 0, %s87
    %s90 = sphi 0, %s89
    %s104 = sphi 0, %s90
    %s108 = sphi 0, %s108
    %s110 = sphi 0, %s108
    %s111 = sphi 0, %s110
    %s125 = sphi 0, %s111
    %s131 = sphi 0, %s133
    %s134 = sphi 0, %s131
    %s135 = sphi 0, %s134
    %s151 = sphi 0, %s135
  $region4: #{conv_block_forward.1} parent=0 // loop_header_branch
    %14 = sbr.rel (%p12) target = $region8
  $region5: #{conv_block_forward.1} parent=0 // loop_body
    %s16 = ssub.s32 %s11, 1
    %s17 = ssub.s32 %s11, 2
    %s18 = sadd.s32 %s11, 1
    %s19 = ssub.s32 %s11, %s18
    %p20 = scmp.eq.s32.totalorder %s19, 0
    %s22 = sadd.s32 %s21, 1
    %s23 = scalar_select %p20, %s21, %s22
    %p26 = pneg %p20
    %p27 = scmp.eq.s32.totalorder %s11, 1
    %p28 = por %p26, %p27
    %p29 = scmp.ne.s32.totalorder %s21, %s24
    %p30 = scmp.eq.s32.totalorder %s11, 0
    %p31 = por %p29, %p30
    %p32 = scmp.ne.s32.totalorder %s21, %s24
    %p33 = scmp.eq.s32.totalorder %s16, 1
    %p34 = por %p32, %p33
    %p35 = scmp.ne.s32.totalorder %s24, %s25
    %p36 = scmp.eq.s32.totalorder %s16, 0
    %p37 = por %p35, %p36
    %p38 = scmp.ne.s32.totalorder %s24, %s25
    %p39 = scmp.eq.s32.totalorder %s17, 1
    %p40 = por %p38, %p39
    %p42 = scmp.ne.s32.totalorder %s25, %s41
    %p43 = scmp.eq.s32.totalorder %s17, 0
    %p44 = por %p42, %p43
    %s46 = sadd.s32 %s45, 1
    %p49 = scmp.eq.s32.totalorder %s11, 1
    %p50 = scmp.ne.s32.totalorder %s45, %s47
    %p51 = scmp.eq.s32.totalorder %s11, 0
    %p52 = por %p50, %p51
    %p53 = scmp.ne.s32.totalorder %s45, %s47
    %p54 = scmp.eq.s32.totalorder %s16, 1
    %p55 = por %p53, %p54
    %p56 = scmp.ne.s32.totalorder %s47, %s48
    %p57 = scmp.eq.s32.totalorder %s16, 0
    %p58 = por %p56, %p57
    %p59 = scmp.ne.s32.totalorder %s47, %s48
    %p60 = scmp.eq.s32.totalorder %s17, 1
    %p61 = por %p59, %p60
    %p63 = scmp.ne.s32.totalorder %s48, %s62
    %p64 = scmp.eq.s32.totalorder %s17, 0
    %p65 = por %p63, %p64
    %s67 = sadd.s32 %s66, 1
    %p70 = scmp.eq.s32.totalorder %s11, 1
    %p71 = scmp.ne.s32.totalorder %s66, %s68
    %p72 = scmp.eq.s32.totalorder %s11, 0
    %p73 = por %p71, %p72
    %p74 = scmp.ne.s32.totalorder %s66, %s68
    %p75 = scmp.eq.s32.totalorder %s16, 1
    %p76 = por %p74, %p75
    %p77 = scmp.ne.s32.totalorder %s68, %s69
    %p78 = scmp.eq.s32.totalorder %s16, 0
    %p79 = por %p77, %p78
    %p80 = scmp.ne.s32.totalorder %s68, %s69
    %p81 = scmp.eq.s32.totalorder %s17, 1
    %p82 = por %p80, %p81
    %p84 = scmp.ne.s32.totalorder %s69, %s83
    %p85 = scmp.eq.s32.totalorder %s17, 0
    %p86 = por %p84, %p85
    %s88 = sadd.s32 %s87, 1
    %p91 = scmp.eq.s32.totalorder %s11, 1
    %p92 = scmp.ne.s32.totalorder %s87, %s89
    %p93 = scmp.eq.s32.totalorder %s11, 0
    %p94 = por %p92, %p93
    %p95 = scmp.ne.s32.totalorder %s87, %s89
    %p96 = scmp.eq.s32.totalorder %s16, 1
    %p97 = por %p95, %p96
    %p98 = scmp.ne.s32.totalorder %s89, %s90
    %p99 = scmp.eq.s32.totalorder %s16, 0
    %p100 = por %p98, %p99
    %p101 = scmp.ne.s32.totalorder %s89, %s90
    %p102 = scmp.eq.s32.totalorder %s17, 1
    %p103 = por %p101, %p102
    %p105 = scmp.ne.s32.totalorder %s90, %s104
    %p106 = scmp.eq.s32.totalorder %s17, 0
    %p107 = por %p105, %p106
    %s109 = sadd.s32 %s108, 1
    %p112 = scmp.eq.s32.totalorder %s11, 1
    %p113 = scmp.ne.s32.totalorder %s108, %s110
    %p114 = scmp.eq.s32.totalorder %s11, 0
    %p115 = por %p113, %p114
    %p116 = scmp.ne.s32.totalorder %s108, %s110
    %p117 = scmp.eq.s32.totalorder %s16, 1
    %p118 = por %p116, %p117
    %p119 = scmp.ne.s32.totalorder %s110, %s111
    %p120 = scmp.eq.s32.totalorder %s16, 0
    %p121 = por %p119, %p120
    %p122 = scmp.ne.s32.totalorder %s110, %s111
    %p123 = scmp.eq.s32.totalorder %s17, 1
    %p124 = por %p122, %p123
    %p126 = scmp.ne.s32.totalorder %s111, %s125
    %p127 = scmp.eq.s32.totalorder %s17, 0
    %p128 = por %p126, %p127
    %s129 = ssub.s32 %s11, %s18
    %p130 = scmp.eq.s32.totalorder %s129, 0
    %s132 = sadd.s32 %s131, 1
    %s133 = scalar_select %p130, %s131, %s132
    %p136 = pneg %p130
    %p137 = scmp.eq.s32.totalorder %s11, 1
    %p138 = por %p136, %p137
    %p139 = scmp.ne.s32.totalorder %s131, %s134
    %p140 = scmp.eq.s32.totalorder %s11, 0
    %p141 = por %p139, %p140
    %p142 = scmp.ne.s32.totalorder %s131, %s134
    %p143 = scmp.eq.s32.totalorder %s16, 1
    %p144 = por %p142, %p143
    %p145 = scmp.ne.s32.totalorder %s134, %s135
    %p146 = scmp.eq.s32.totalorder %s16, 0
    %p147 = por %p145, %p146
    %p148 = scmp.ne.s32.totalorder %s134, %s135
    %p149 = scmp.eq.s32.totalorder %s17, 1
    %p150 = por %p148, %p149
    %p152 = scmp.ne.s32.totalorder %s135, %s151
    %p153 = scmp.eq.s32.totalorder %s17, 0
    %p154 = por %p152, %p153
    %p155 = scmp.le.s32.totalorder 1, %s11
    %p156 = scmp.lt.s32.totalorder %s11, 3
    %p157 = pnand %p155, %p156
    %p158 = pneg %p157
    // Predicated region
    $region9: #{conv_block_forward.1} parent=5 // pred_check
      _
    $region10: #{conv_block_forward.1} parent=5 // pred_check_branch
      %160 = sbr.rel (%p157) target = $region12
    $region11: #{conv_block_forward.1} parent=5 // pred_region
      %s161 = ssub.s32 %s11, 1
      // Predicated region
      $region13: #{conv_block_forward.1} parent=11 // pred_check
        %p162 = pneg %p58
      $region14: #{conv_block_forward.1} parent=11 // pred_check_branch
        %164 = sbr.rel (%p162) target = $region16
      $region15: #{conv_block_forward.1} parent=11 // pred_region
        _
      $region16: #{conv_block_forward.1} parent=11 // pred_fallthru
        _
      // Predicated region
      $region17: #{conv_block_forward.1} parent=11 // pred_check
        %p165 = pneg %p79
      $region18: #{conv_block_forward.1} parent=11 // pred_check_branch
        %167 = sbr.rel (%p165) target = $region20
      $region19: #{conv_block_forward.1} parent=11 // pred_region
        _
      $region20: #{conv_block_forward.1} parent=11 // pred_fallthru
        _
      // Predicated region
      $region21: #{conv_block_forward.1} parent=11 // pred_check
        %p168 = pneg %p100
      $region22: #{conv_block_forward.1} parent=11 // pred_check_branch
        %170 = sbr.rel (%p168) target = $region24
      $region23: #{conv_block_forward.1} parent=11 // pred_region
        _
      $region24: #{conv_block_forward.1} parent=11 // pred_fallthru
        _
      // Predicated region
      $region25: #{conv_block_forward.1} parent=11 // pred_check
        %p171 = pneg %p121
      $region26: #{conv_block_forward.1} parent=11 // pred_check_branch
        %173 = sbr.rel (%p171) target = $region28
      $region27: #{conv_block_forward.1} parent=11 // pred_region
        _
      $region28: #{conv_block_forward.1} parent=11 // pred_fallthru
        _
    $region12: #{conv_block_forward.1} parent=5 // pred_fallthru
      _
    %p174 = scmp.lt.s32.totalorder %s11, 2
    // Predicated region
    $region29: #{conv_block_forward.1} parent=5 // pred_check
      %p175 = pneg %p174
    $region30: #{conv_block_forward.1} parent=5 // pred_check_branch
      %177 = sbr.rel (%p175) target = $region32
    $region31: #{conv_block_forward.1} parent=5 // pred_region
      // Predicated region
      $region33: #{conv_block_forward.1} parent=31 // pred_check
        %p178 = pneg %p31
      $region34: #{conv_block_forward.1} parent=31 // pred_check_branch
        %180 = sbr.rel (%p178) target = $region36
      $region35: #{conv_block_forward.1} parent=31 // pred_region
        %p181 = scmp.lt.s32.totalorder %s11, 1
        %s182 = scalar_select %p181, %s11, 1
        %s183 = smul.addr %s182, 2
        %s184 = smul.addr %s183, 4
        %s185 = scalar_lea.vmem %s0, %s184
      $region36: #{conv_block_forward.1} parent=31 // pred_fallthru
        _
    $region32: #{conv_block_forward.1} parent=5 // pred_fallthru
      _
    %p186 = scmp.le.s32.totalorder 1, %s11
    %p187 = scmp.lt.s32.totalorder %s11, 3
    %p188 = pnand %p186, %p187
    %p189 = pneg %p188
    // Predicated region
    $region37: #{conv_block_forward.1} parent=5 // pred_check
      _
    $region38: #{conv_block_forward.1} parent=5 // pred_check_branch
      %191 = sbr.rel (%p188) target = $region40
    $region39: #{conv_block_forward.1} parent=5 // pred_region
      %s192 = ssub.s32 %s11, 1
      %p193 = scmp.lt.s32.totalorder %s16, 1
      %s194 = scalar_select %p193, %s16, 1
      %s195 = smul.addr %s194, 2
      %s196 = smul.addr %s195, 4
      %s197 = scalar_lea.vmem %s0, %s196
      %p198 = pneg %p37
      %p199 = pneg %p34
      %p200 = pneg %p58
      %p201 = pneg %p55
      %p202 = pneg %p79
      %p203 = pneg %p76
      %p204 = pneg %p100
      %p205 = pneg %p97
      %p206 = pneg %p121
      %p207 = pneg %p118
      %p208 = pneg %p147
      %p209 = pneg %p144
      %p210 = scmp.lt.s32.totalorder %s16, 1
      %s211 = scalar_select %p210, %s16, 1
      %s212 = smul.addr %s211, 2
      %s213 = smul.addr %s212, 8
      %s214 = scalar_lea.vmem %s5, %s213
      %p215 = scmp.lt.s32.totalorder %s16, 1
      %s216 = scalar_select %p215, %s16, 1
      %s217 = smul.addr %s216, 2
      %s218 = smul.addr %s217, 4
      %s219 = scalar_lea.vmem %s0, %s218
      %p220 = scmp.lt.s32.totalorder %s16, 1
      %s221 = scalar_select %p220, %s16, 1
      %s222 = smul.addr %s221, 2
      %s223 = smul.addr %s222, 8
      %s224 = scalar_lea.vmem %s5, %s223
      %vm226 = vcmask 516096
      %227 = vst.msk [vmem:[#allocation2] sm:$0x1] %vm226, 0.0
      %228 = vst.msk [vmem:[#allocation2 + $0x11] sm:$0x1] %vm226, 0.0
      %v229 = vld [vmem:[%s219] sm:$0xf]
      %v230 = vld [vmem:[%s219 + $0x4] sm:$0xf]
      %v231 = vunpack.c.l.bf16 %v229
      %v232 = vunpack.c.l.bf16 %v230
      %vm233 = vcmask 523264
      %234 = vst.msk [vmem:[#allocation2 + $0x1] sm:$0xff] %vm233, %v231
      %235 = vst.msk [vmem:[#allocation2 + $0x9] sm:$0xff] %vm233, %v232
      %v236 = vld [vmem:[%s2] sm:$0x1]
      %v238 = vlaneseq
      %v239 = vshrl.u32 %v238, 7
      %v240 = vsub.s32 0, %v239
      %v241 = vrot.slane %v236, %v240
      %v243 = vld [vmem:[#allocation2] sm:$0xff]
      %v244 = vld [vmem:[#allocation2 + $0x8] sm:$0xff]
      %v245 = vpack.c.bf16 %v244, %v243
      %v246 = vld [vmem:[%s1] sm:$0xf]
      %v247 = vld [vmem:[%s1 + $0x4] sm:$0xf]
      %v248 = vld [vmem:[%s1 + $0x8] sm:$0xf]
      %v249 = vld [vmem:[%s1 + $0xc] sm:$0xf]
      %v250 = vld [vmem:[%s1 + $0x10] sm:$0xf]
      %v251 = vld [vmem:[%s1 + $0x14] sm:$0xf]
      %v252 = vld [vmem:[%s1 + $0x18] sm:$0xf]
      %v253 = vld [vmem:[%s1 + $0x1c] sm:$0xf]
      %v262 = vunpack.c.l.b16 %v246
      %v263 = vunpack.c.l.b16 %v247
      %v264 = vunpack.c.l.b16 %v248
      %v265 = vunpack.c.l.b16 %v249
      %v266 = vunpack.c.l.b16 %v250
      %v267 = vunpack.c.l.b16 %v251
      %v268 = vunpack.c.l.b16 %v252
      %v269 = vunpack.c.l.b16 %v253
      %v270 = vpack.c.b16 %v263, %v262
      %v271 = vpack.c.b16 %v265, %v264
      %v272 = vpack.c.b16 %v267, %v266
      %v273 = vpack.c.b16 %v269, %v268
      %v279 = vsel %vm233, %v245, 0
      %281 = vmatprep.subr.bf16.mxu0 0
      %282 = vmatpush1.bf16.msra.mxu0 %v270
      %283 = vmatprep.subr.bf16.mxu0 0
      %284 = vmatpush1.bf16.msra.mxu0 %v271
      %285 = vmatprep.subr.bf16.mxu0 0
      %286 = vmatpush1.bf16.msra.mxu0 %v272
      %287 = vmatprep.subr.bf16.mxu0 0
      %288 = vmatpush1.bf16.msra.mxu0 %v273
      %289 = vmatprep.subr.bf16.mxu0 0
      %290 = vmatpush1.bf16.msra.mxu0 0
      %291 = vmatprep.subr.bf16.mxu0 0
      %292 = vmatpush1.bf16.msra.mxu0 0
      %293 = vmatprep.subr.bf16.mxu0 0
      %294 = vmatpush1.bf16.msra.mxu0 0
      %295 = vmatprep.subr.bf16.mxu0 0
      %296 = vmatpush1.bf16.msra.mxu0 0
      %297 = vmatprep.subr.bf16.mxu0 0
      %298 = vmatpush1.bf16.msra.mxu0 0
      %299 = vmatprep.subr.bf16.mxu0 0
      %300 = vmatpush1.bf16.msra.mxu0 0
      %301 = vmatprep.subr.bf16.mxu0 0
      %302 = vmatpush1.bf16.msra.mxu0 0
      %303 = vmatprep.subr.bf16.mxu0 0
      %304 = vmatpush1.bf16.msra.mxu0 0
      %305 = vmatprep.subr.bf16.mxu0 0
      %306 = vmatpush1.bf16.msra.mxu0 0
      %307 = vmatprep.subr.bf16.mxu0 0
      %308 = vmatpush1.bf16.msra.mxu0 0
      %309 = vmatprep.subr.bf16.mxu0 0
      %310 = vmatpush1.bf16.msra.mxu0 0
      %311 = vmatprep.subr.bf16.mxu0 0
      %312 = vmatpush1.bf16.msra.mxu0 0
      %313 = vmatprep.mubr.bf16.mxu0 0
      %314 = vmatmul.mubr.bf16.gmra.mrb[0].mxu0 %v279
      %v315 = vpop.f32.mrb[0].mxu0
      %v316 = vadd.f32 0.0, %v315
      %v317 = vpop.f32.mrb[0].mxu0
      %v318 = vpop.f32.mrb[0].mxu0
      %v319 = vadd.f32 0.0, %v318
      %v320 = vpop.f32.mrb[0].mxu0
      %321 = vdwg.mxu0
      %v322 = vadd.f32 %v241, %v316
      %v323 = vadd.f32 %v241, %v319
      %v324 = vld [vmem:[#allocation2 + $0x1] sm:$0xff]
      %v325 = vld [vmem:[#allocation2 + $0x9] sm:$0xff]
      %v326 = vpack.c.bf16 %v325, %v324
      %s327 = scalar_lea.vmem %s1, 32
      %v328 = vld [vmem:[%s327] sm:$0xf]
      %v329 = vld [vmem:[%s327 + $0x4] sm:$0xf]
      %v330 = vld [vmem:[%s327 + $0x8] sm:$0xf]
      %v331 = vld [vmem:[%s327 + $0xc] sm:$0xf]
      %v332 = vld [vmem:[%s327 + $0x10] sm:$0xf]
      %v333 = vld [vmem:[%s327 + $0x14] sm:$0xf]
      %v334 = vld [vmem:[%s327 + $0x18] sm:$0xf]
      %v335 = vld [vmem:[%s327 + $0x1c] sm:$0xf]
      %v344 = vunpack.c.l.b16 %v328
      %v345 = vunpack.c.l.b16 %v329
      %v346 = vunpack.c.l.b16 %v330
      %v347 = vunpack.c.l.b16 %v331
      %v348 = vunpack.c.l.b16 %v332
      %v349 = vunpack.c.l.b16 %v333
      %v350 = vunpack.c.l.b16 %v334
      %v351 = vunpack.c.l.b16 %v335
      %v352 = vpack.c.b16 %v345, %v344
      %v353 = vpack.c.b16 %v347, %v346
      %v354 = vpack.c.b16 %v349, %v348
      %v355 = vpack.c.b16 %v351, %v350
      %v361 = vsel %vm233, %v326, 0
      %363 = vmatprep.subr.bf16.mxu0 0
      %364 = vmatpush1.bf16.msra.mxu0 %v352
      %365 = vmatprep.subr.bf16.mxu0 0
      %366 = vmatpush1.bf16.msra.mxu0 %v353
      %367 = vmatprep.subr.bf16.mxu0 0
      %368 = vmatpush1.bf16.msra.mxu0 %v354
      %369 = vmatprep.subr.bf16.mxu0 0
      %370 = vmatpush1.bf16.msra.mxu0 %v355
      %371 = vmatprep.subr.bf16.mxu0 0
      %372 = vmatpush1.bf16.msra.mxu0 0
      %373 = vmatprep.subr.bf16.mxu0 0
      %374 = vmatpush1.bf16.msra.mxu0 0
      %375 = vmatprep.subr.bf16.mxu0 0
      %376 = vmatpush1.bf16.msra.mxu0 0
      %377 = vmatprep.subr.bf16.mxu0 0
      %378 = vmatpush1.bf16.msra.mxu0 0
      %379 = vmatprep.subr.bf16.mxu0 0
      %380 = vmatpush1.bf16.msra.mxu0 0
      %381 = vmatprep.subr.bf16.mxu0 0
      %382 = vmatpush1.bf16.msra.mxu0 0
      %383 = vmatprep.subr.bf16.mxu0 0
      %384 = vmatpush1.bf16.msra.mxu0 0
      %385 = vmatprep.subr.bf16.mxu0 0
      %386 = vmatpush1.bf16.msra.mxu0 0
      %387 = vmatprep.subr.bf16.mxu0 0
      %388 = vmatpush1.bf16.msra.mxu0 0
      %389 = vmatprep.subr.bf16.mxu0 0
      %390 = vmatpush1.bf16.msra.mxu0 0
      %391 = vmatprep.subr.bf16.mxu0 0
      %392 = vmatpush1.bf16.msra.mxu0 0
      %393 = vmatprep.subr.bf16.mxu0 0
      %394 = vmatpush1.bf16.msra.mxu0 0
      %395 = vmatprep.mubr.bf16.mxu0 0
      %396 = vmatmul.mubr.bf16.gmra.mrb[0].mxu0 %v361
      %v397 = vpop.f32.mrb[0].mxu0
      %v398 = vadd.f32 0.0, %v397
      %v399 = vpop.f32.mrb[0].mxu0
      %v400 = vpop.f32.mrb[0].mxu0
      %v401 = vadd.f32 0.0, %v400
      %v402 = vpop.f32.mrb[0].mxu0
      %403 = vdwg.mxu0
      %v404 = vadd.f32 %v322, %v398
      %v405 = vadd.f32 %v323, %v401
      %v406 = vld [vmem:[#allocation2 + $0x2] sm:$0xff]
      %v407 = vld [vmem:[#allocation2 + $0xa] sm:$0xff]
      %v408 = vpack.c.bf16 %v407, %v406
      %s409 = scalar_lea.vmem %s1, 64
      %v410 = vld [vmem:[%s409] sm:$0xf]
      %v411 = vld [vmem:[%s409 + $0x4] sm:$0xf]
      %v412 = vld [vmem:[%s409 + $0x8] sm:$0xf]
      %v413 = vld [vmem:[%s409 + $0xc] sm:$0xf]
      %v414 = vld [vmem:[%s409 + $0x10] sm:$0xf]
      %v415 = vld [vmem:[%s409 + $0x14] sm:$0xf]
      %v416 = vld [vmem:[%s409 + $0x18] sm:$0xf]
      %v417 = vld [vmem:[%s409 + $0x1c] sm:$0xf]
      %v426 = vunpack.c.l.b16 %v410
      %v427 = vunpack.c.l.b16 %v411
      %v428 = vunpack.c.l.b16 %v412
      %v429 = vunpack.c.l.b16 %v413
      %v430 = vunpack.c.l.b16 %v414
      %v431 = vunpack.c.l.b16 %v415
      %v432 = vunpack.c.l.b16 %v416
      %v433 = vunpack.c.l.b16 %v417
      %v434 = vpack.c.b16 %v427, %v426
      %v435 = vpack.c.b16 %v429, %v428
      %v436 = vpack.c.b16 %v431, %v430
      %v437 = vpack.c.b16 %v433, %v432
      %v443 = vsel %vm233, %v408, 0
      %445 = vmatprep.subr.bf16.mxu0 0
      %446 = vmatpush1.bf16.msra.mxu0 %v434
      %447 = vmatprep.subr.bf16.mxu0 0
      %448 = vmatpush1.bf16.msra.mxu0 %v435
      %449 = vmatprep.subr.bf16.mxu0 0
      %450 = vmatpush1.bf16.msra.mxu0 %v436
      %451 = vmatprep.subr.bf16.mxu0 0
      %452 = vmatpush1.bf16.msra.mxu0 %v437
      %453 = vmatprep.subr.bf16.mxu0 0
      %454 = vmatpush1.bf16.msra.mxu0 0
      %455 = vmatprep.subr.bf16.mxu0 0
      %456 = vmatpush1.bf16.msra.mxu0 0
      %457 = vmatprep.subr.bf16.mxu0 0
      %458 = vmatpush1.bf16.msra.mxu0 0
      %459 = vmatprep.subr.bf16.mxu0 0
      %460 = vmatpush1.bf16.msra.mxu0 0
      %461 = vmatprep.subr.bf16.mxu0 0
      %462 = vmatpush1.bf16.msra.mxu0 0
      %463 = vmatprep.subr.bf16.mxu0 0
      %464 = vmatpush1.bf16.msra.mxu0 0
      %465 = vmatprep.subr.bf16.mxu0 0
      %466 = vmatpush1.bf16.msra.mxu0 0
      %467 = vmatprep.subr.bf16.mxu0 0
      %468 = vmatpush1.bf16.msra.mxu0 0
      %469 = vmatprep.subr.bf16.mxu0 0
      %470 = vmatpush1.bf16.msra.mxu0 0
      %471 = vmatprep.subr.bf16.mxu0 0
      %472 = vmatpush1.bf16.msra.mxu0 0
      %473 = vmatprep.subr.bf16.mxu0 0
      %474 = vmatpush1.bf16.msra.mxu0 0
      %475 = vmatprep.subr.bf16.mxu0 0
      %476 = vmatpush1.bf16.msra.mxu0 0
      %477 = vmatprep.mubr.bf16.mxu0 0
      %478 = vmatmul.mubr.bf16.gmra.mrb[0].mxu0 %v443
      %v479 = vpop.f32.mrb[0].mxu0
      %v480 = vadd.f32 0.0, %v479
      %v481 = vpop.f32.mrb[0].mxu0
      %v482 = vpop.f32.mrb[0].mxu0
      %v483 = vadd.f32 0.0, %v482
      %v484 = vpop.f32.mrb[0].mxu0
      %485 = vdwg.mxu0
      %v486 = vadd.f32 %v404, %v480
      %v487 = vadd.f32 %v405, %v483
      %v488 = vmax.f32 %v486, 0.0
      %v489 = vmax.f32 %v487, 0.0
      %490 = vst [vmem:[#allocation3] sm:$0x1] 0.0
      %491 = vst [vmem:[#allocation3 + $0x11] sm:$0x1] 0.0
      %492 = vst [vmem:[#allocation3 + $0x1] sm:$0xff] %v488
      %493 = vst [vmem:[#allocation3 + $0x9] sm:$0xff] %v489
      %v494 = vld [vmem:[%s4] sm:$0x1]
      %v496 = vlaneseq
      %v497 = vshrl.u32 %v496, 7
      %v498 = vsub.s32 0, %v497
      %v499 = vrot.slane %v494, %v498
      %v501 = vld [vmem:[#allocation3] sm:$0xff]
      %v502 = vld [vmem:[#allocation3 + $0x8] sm:$0xff]
      %v503 = vpack.c.bf16 %v502, %v501
      %v504 = vld [vmem:[%s3] sm:$0xf]
      %v505 = vld [vmem:[%s3 + $0x4] sm:$0xf]
      %v506 = vld [vmem:[%s3 + $0x8] sm:$0xf]
      %v507 = vld [vmem:[%s3 + $0xc] sm:$0xf]
      %v508 = vld [vmem:[%s3 + $0x10] sm:$0xf]
      %v509 = vld [vmem:[%s3 + $0x14] sm:$0xf]
      %v510 = vld [vmem:[%s3 + $0x18] sm:$0xf]
      %v511 = vld [vmem:[%s3 + $0x1c] sm:$0xf]
      %v512 = vld [vmem:[%s3 + $0x20] sm:$0xf]
      %v513 = vld [vmem:[%s3 + $0x24] sm:$0xf]
      %v514 = vld [vmem:[%s3 + $0x28] sm:$0xf]
      %v515 = vld [vmem:[%s3 + $0x2c] sm:$0xf]
      %v516 = vld [vmem:[%s3 + $0x30] sm:$0xf]
      %v517 = vld [vmem:[%s3 + $0x34] sm:$0xf]
      %v518 = vld [vmem:[%s3 + $0x38] sm:$0xf]
      %v519 = vld [vmem:[%s3 + $0x3c] sm:$0xf]
      %v536 = vunpack.c.l.b16 %v504
      %v537 = vunpack.c.l.b16 %v505
      %v538 = vunpack.c.l.b16 %v506
      %v539 = vunpack.c.l.b16 %v507
      %v540 = vunpack.c.l.b16 %v508
      %v541 = vunpack.c.l.b16 %v509
      %v542 = vunpack.c.l.b16 %v510
      %v543 = vunpack.c.l.b16 %v511
      %v544 = vunpack.c.l.b16 %v512
      %v545 = vunpack.c.l.b16 %v513
      %v546 = vunpack.c.l.b16 %v514
      %v547 = vunpack.c.l.b16 %v515
      %v548 = vunpack.c.l.b16 %v516
      %v549 = vunpack.c.l.b16 %v517
      %v550 = vunpack.c.l.b16 %v518
      %v551 = vunpack.c.l.b16 %v519
      %v552 = vpack.c.b16 %v537, %v536
      %v553 = vpack.c.b16 %v539, %v538
      %v554 = vpack.c.b16 %v541, %v540
      %v555 = vpack.c.b16 %v543, %v542
      %v556 = vpack.c.b16 %v545, %v544
      %v557 = vpack.c.b16 %v547, %v546
      %v558 = vpack.c.b16 %v549, %v548
      %v559 = vpack.c.b16 %v551, %v550
      %568 = vmatprep.subr.bf16.mxu0 0
      %569 = vmatpush1.bf16.msra.mxu0 %v552
      %570 = vmatprep.subr.bf16.mxu0 0
      %571 = vmatpush1.bf16.msra.mxu0 %v553
      %572 = vmatprep.subr.bf16.mxu0 0
      %573 = vmatpush1.bf16.msra.mxu0 %v554
      %574 = vmatprep.subr.bf16.mxu0 0
      %575 = vmatpush1.bf16.msra.mxu0 %v555
      %576 = vmatprep.subr.bf16.mxu0 0
      %577 = vmatpush1.bf16.msra.mxu0 %v556
      %578 = vmatprep.subr.bf16.mxu0 0
      %579 = vmatpush1.bf16.msra.mxu0 %v557
      %580 = vmatprep.subr.bf16.mxu0 0
      %581 = vmatpush1.bf16.msra.mxu0 %v558
      %582 = vmatprep.subr.bf16.mxu0 0
      %583 = vmatpush1.bf16.msra.mxu0 %v559
      %584 = vmatprep.subr.bf16.mxu0 0
      %585 = vmatpush1.bf16.msra.mxu0 0
      %586 = vmatprep.subr.bf16.mxu0 0
      %587 = vmatpush1.bf16.msra.mxu0 0
      %588 = vmatprep.subr.bf16.mxu0 0
      %589 = vmatpush1.bf16.msra.mxu0 0
      %590 = vmatprep.subr.bf16.mxu0 0
      %591 = vmatpush1.bf16.msra.mxu0 0
      %592 = vmatprep.subr.bf16.mxu0 0
      %593 = vmatpush1.bf16.msra.mxu0 0
      %594 = vmatprep.subr.bf16.mxu0 0
      %595 = vmatpush1.bf16.msra.mxu0 0
      %596 = vmatprep.subr.bf16.mxu0 0
      %597 = vmatpush1.bf16.msra.mxu0 0
      %598 = vmatprep.subr.bf16.mxu0 0
      %599 = vmatpush1.bf16.msra.mxu0 0
      %600 = vmatprep.mubr.bf16.mxu0 0
      %601 = vmatmul.mubr.bf16.gmra.mrb[0].mxu0 %v503
      %v602 = vpop.f32.mrb[0].mxu0
      %v603 = vadd.f32 0.0, %v602
      %v604 = vpop.f32.mrb[0].mxu0
      %v605 = vpop.f32.mrb[0].mxu0
      %v606 = vadd.f32 0.0, %v605
      %v607 = vpop.f32.mrb[0].mxu0
      %608 = vdwg.mxu0
      %v609 = vadd.f32 %v499, %v603
      %v610 = vadd.f32 %v499, %v606
      %v611 = vld [vmem:[#allocation3 + $0x1] sm:$0xff]
      %v612 = vld [vmem:[#allocation3 + $0x9] sm:$0xff]
      %v613 = vpack.c.bf16 %v612, %v611
      %s614 = scalar_lea.vmem %s3, 64
      %v615 = vld [vmem:[%s614] sm:$0xf]
      %v616 = vld [vmem:[%s614 + $0x4] sm:$0xf]
      %v617 = vld [vmem:[%s614 + $0x8] sm:$0xf]
      %v618 = vld [vmem:[%s614 + $0xc] sm:$0xf]
      %v619 = vld [vmem:[%s614 + $0x10] sm:$0xf]
      %v620 = vld [vmem:[%s614 + $0x14] sm:$0xf]
      %v621 = vld [vmem:[%s614 + $0x18] sm:$0xf]
      %v622 = vld [vmem:[%s614 + $0x1c] sm:$0xf]
      %v623 = vld [vmem:[%s614 + $0x20] sm:$0xf]
      %v624 = vld [vmem:[%s614 + $0x24] sm:$0xf]
      %v625 = vld [vmem:[%s614 + $0x28] sm:$0xf]
      %v626 = vld [vmem:[%s614 + $0x2c] sm:$0xf]
      %v627 = vld [vmem:[%s614 + $0x30] sm:$0xf]
      %v628 = vld [vmem:[%s614 + $0x34] sm:$0xf]
      %v629 = vld [vmem:[%s614 + $0x38] sm:$0xf]
      %v630 = vld [vmem:[%s614 + $0x3c] sm:$0xf]
      %v647 = vunpack.c.l.b16 %v615
      %v648 = vunpack.c.l.b16 %v616
      %v649 = vunpack.c.l.b16 %v617
      %v650 = vunpack.c.l.b16 %v618
      %v651 = vunpack.c.l.b16 %v619
      %v652 = vunpack.c.l.b16 %v620
      %v653 = vunpack.c.l.b16 %v621
      %v654 = vunpack.c.l.b16 %v622
      %v655 = vunpack.c.l.b16 %v623
      %v656 = vunpack.c.l.b16 %v624
      %v657 = vunpack.c.l.b16 %v625
      %v658 = vunpack.c.l.b16 %v626
      %v659 = vunpack.c.l.b16 %v627
      %v660 = vunpack.c.l.b16 %v628
      %v661 = vunpack.c.l.b16 %v629
      %v662 = vunpack.c.l.b16 %v630
      %v663 = vpack.c.b16 %v648, %v647
      %v664 = vpack.c.b16 %v650, %v649
      %v665 = vpack.c.b16 %v652, %v651
      %v666 = vpack.c.b16 %v654, %v653
      %v667 = vpack.c.b16 %v656, %v655
      %v668 = vpack.c.b16 %v658, %v657
      %v669 = vpack.c.b16 %v660, %v659
      %v670 = vpack.c.b16 %v662, %v661
      %679 = vmatprep.subr.bf16.mxu0 0
      %680 = vmatpush1.bf16.msra.mxu0 %v663
      %681 = vmatprep.subr.bf16.mxu0 0
      %682 = vmatpush1.bf16.msra.mxu0 %v664
      %683 = vmatprep.subr.bf16.mxu0 0
      %684 = vmatpush1.bf16.msra.mxu0 %v665
      %685 = vmatprep.subr.bf16.mxu0 0
      %686 = vmatpush1.bf16.msra.mxu0 %v666
      %687 = vmatprep.subr.bf16.mxu0 0
      %688 = vmatpush1.bf16.msra.mxu0 %v667
      %689 = vmatprep.subr.bf16.mxu0 0
      %690 = vmatpush1.bf16.msra.mxu0 %v668
      %691 = vmatprep.subr.bf16.mxu0 0
      %692 = vmatpush1.bf16.msra.mxu0 %v669
      %693 = vmatprep.subr.bf16.mxu0 0
      %694 = vmatpush1.bf16.msra.mxu0 %v670
      %695 = vmatprep.subr.bf16.mxu0 0
      %696 = vmatpush1.bf16.msra.mxu0 0
      %697 = vmatprep.subr.bf16.mxu0 0
      %698 = vmatpush1.bf16.msra.mxu0 0
      %699 = vmatprep.subr.bf16.mxu0 0
      %700 = vmatpush1.bf16.msra.mxu0 0
      %701 = vmatprep.subr.bf16.mxu0 0
      %702 = vmatpush1.bf16.msra.mxu0 0
      %703 = vmatprep.subr.bf16.mxu0 0
      %704 = vmatpush1.bf16.msra.mxu0 0
      %705 = vmatprep.subr.bf16.mxu0 0
      %706 = vmatpush1.bf16.msra.mxu0 0
      %707 = vmatprep.subr.bf16.mxu0 0
      %708 = vmatpush1.bf16.msra.mxu0 0
      %709 = vmatprep.subr.bf16.mxu0 0
      %710 = vmatpush1.bf16.msra.mxu0 0
      %711 = vmatprep.mubr.bf16.mxu0 0
      %712 = vmatmul.mubr.bf16.gmra.mrb[0].mxu0 %v613
      %v713 = vpop.f32.mrb[0].mxu0
      %v714 = vadd.f32 0.0, %v713
      %v715 = vpop.f32.mrb[0].mxu0
      %v716 = vpop.f32.mrb[0].mxu0
      %v717 = vadd.f32 0.0, %v716
      %v718 = vpop.f32.mrb[0].mxu0
      %719 = vdwg.mxu0
      %v720 = vadd.f32 %v609, %v714
      %v721 = vadd.f32 %v610, %v717
      %v722 = vld [vmem:[#allocation3 + $0x2] sm:$0xff]
      %v723 = vld [vmem:[#allocation3 + $0xa] sm:$0xff]
      %v724 = vpack.c.bf16 %v723, %v722
      %s725 = scalar_lea.vmem %s3, 128
      %v726 = vld [vmem:[%s725] sm:$0xf]
      %v727 = vld [vmem:[%s725 + $0x4] sm:$0xf]
      %v728 = vld [vmem:[%s725 + $0x8] sm:$0xf]
      %v729 = vld [vmem:[%s725 + $0xc] sm:$0xf]
      %v730 = vld [vmem:[%s725 + $0x10] sm:$0xf]
      %v731 = vld [vmem:[%s725 + $0x14] sm:$0xf]
      %v732 = vld [vmem:[%s725 + $0x18] sm:$0xf]
      %v733 = vld [vmem:[%s725 + $0x1c] sm:$0xf]
      %v734 = vld [vmem:[%s725 + $0x20] sm:$0xf]
      %v735 = vld [vmem:[%s725 + $0x24] sm:$0xf]
      %v736 = vld [vmem:[%s725 + $0x28] sm:$0xf]
      %v737 = vld [vmem:[%s725 + $0x2c] sm:$0xf]
      %v738 = vld [vmem:[%s725 + $0x30] sm:$0xf]
      %v739 = vld [vmem:[%s725 + $0x34] sm:$0xf]
      %v740 = vld [vmem:[%s725 + $0x38] sm:$0xf]
      %v741 = vld [vmem:[%s725 + $0x3c] sm:$0xf]
      %v758 = vunpack.c.l.b16 %v726
      %v759 = vunpack.c.l.b16 %v727
      %v760 = vunpack.c.l.b16 %v728
      %v761 = vunpack.c.l.b16 %v729
      %v762 = vunpack.c.l.b16 %v730
      %v763 = vunpack.c.l.b16 %v731
      %v764 = vunpack.c.l.b16 %v732
      %v765 = vunpack.c.l.b16 %v733
      %v766 = vunpack.c.l.b16 %v734
      %v767 = vunpack.c.l.b16 %v735
      %v768 = vunpack.c.l.b16 %v736
      %v769 = vunpack.c.l.b16 %v737
      %v770 = vunpack.c.l.b16 %v738
      %v771 = vunpack.c.l.b16 %v739
      %v772 = vunpack.c.l.b16 %v740
      %v773 = vunpack.c.l.b16 %v741
      %v774 = vpack.c.b16 %v759, %v758
      %v775 = vpack.c.b16 %v761, %v760
      %v776 = vpack.c.b16 %v763, %v762
      %v777 = vpack.c.b16 %v765, %v764
      %v778 = vpack.c.b16 %v767, %v766
      %v779 = vpack.c.b16 %v769, %v768
      %v780 = vpack.c.b16 %v771, %v770
      %v781 = vpack.c.b16 %v773, %v772
      %790 = vmatprep.subr.bf16.mxu0 0
      %791 = vmatpush1.bf16.msra.mxu0 %v774
      %792 = vmatprep.subr.bf16.mxu0 0
      %793 = vmatpush1.bf16.msra.mxu0 %v775
      %794 = vmatprep.subr.bf16.mxu0 0
      %795 = vmatpush1.bf16.msra.mxu0 %v776
      %796 = vmatprep.subr.bf16.mxu0 0
      %797 = vmatpush1.bf16.msra.mxu0 %v777
      %798 = vmatprep.subr.bf16.mxu0 0
      %799 = vmatpush1.bf16.msra.mxu0 %v778
      %800 = vmatprep.subr.bf16.mxu0 0
      %801 = vmatpush1.bf16.msra.mxu0 %v779
      %802 = vmatprep.subr.bf16.mxu0 0
      %803 = vmatpush1.bf16.msra.mxu0 %v780
      %804 = vmatprep.subr.bf16.mxu0 0
      %805 = vmatpush1.bf16.msra.mxu0 %v781
      %806 = vmatprep.subr.bf16.mxu0 0
      %807 = vmatpush1.bf16.msra.mxu0 0
      %808 = vmatprep.subr.bf16.mxu0 0
      %809 = vmatpush1.bf16.msra.mxu0 0
      %810 = vmatprep.subr.bf16.mxu0 0
      %811 = vmatpush1.bf16.msra.mxu0 0
      %812 = vmatprep.subr.bf16.mxu0 0
      %813 = vmatpush1.bf16.msra.mxu0 0
      %814 = vmatprep.subr.bf16.mxu0 0
      %815 = vmatpush1.bf16.msra.mxu0 0
      %816 = vmatprep.subr.bf16.mxu0 0
      %817 = vmatpush1.bf16.msra.mxu0 0
      %818 = vmatprep.subr.bf16.mxu0 0
      %819 = vmatpush1.bf16.msra.mxu0 0
      %820 = vmatprep.subr.bf16.mxu0 0
      %821 = vmatpush1.bf16.msra.mxu0 0
      %822 = vmatprep.mubr.bf16.mxu0 0
      %823 = vmatmul.mubr.bf16.gmra.mrb[0].mxu0 %v724
      %v824 = vpop.f32.mrb[0].mxu0
      %v825 = vadd.f32 0.0, %v824
      %v826 = vpop.f32.mrb[0].mxu0
      %v827 = vpop.f32.mrb[0].mxu0
      %v828 = vadd.f32 0.0, %v827
      %v829 = vpop.f32.mrb[0].mxu0
      %830 = vdwg.mxu0
      %v831 = vadd.f32 %v720, %v825
      %v832 = vadd.f32 %v721, %v828
      %v833 = vmax.f32 %v831, 0.0
      %v834 = vmax.f32 %v832, 0.0
      %835 = vst [vmem:[%s224] sm:$0xff] %v833
      %836 = vst [vmem:[%s224 + $0x8] sm:$0xff] %v834
      %p837 = scmp.lt.s32.totalorder %s16, 1
      %s838 = scalar_select %p837, %s16, 1
      %s839 = smul.addr %s838, 2
      %s840 = smul.addr %s839, 8
      %s841 = scalar_lea.vmem %s5, %s840
      // Predicated region
      $region41: #{conv_block_forward.1} parent=39 // pred_check
        %p842 = pneg %p144
      $region42: #{conv_block_forward.1} parent=39 // pred_check_branch
        %844 = sbr.rel (%p842) target = $region44
      $region43: #{conv_block_forward.1} parent=39 // pred_region
        _
      $region44: #{conv_block_forward.1} parent=39 // pred_fallthru
        _
    $region40: #{conv_block_forward.1} parent=5 // pred_fallthru
      _
    %p845 = scmp.le.s32.totalorder 2, %s11
    // Predicated region
    $region45: #{conv_block_forward.1} parent=5 // pred_check
      %p846 = pneg %p845
    $region46: #{conv_block_forward.1} parent=5 // pred_check_branch
      %848 = sbr.rel (%p846) target = $region48
    $region47: #{conv_block_forward.1} parent=5 // pred_region
      %s849 = ssub.s32 %s11, 2
      // Predicated region
      $region49: #{conv_block_forward.1} parent=47 // pred_check
        %p850 = pneg %p150
      $region50: #{conv_block_forward.1} parent=47 // pred_check_branch
        %852 = sbr.rel (%p850) target = $region52
      $region51: #{conv_block_forward.1} parent=47 // pred_region
        %p853 = scmp.lt.s32.totalorder %s17, 1
        %s854 = scalar_select %p853, %s17, 1
        %s855 = smul.addr %s854, 2
        %s856 = smul.addr %s855, 8
        %s857 = scalar_lea.vmem %s5, %s856
      $region52: #{conv_block_forward.1} parent=47 // pred_fallthru
        _
    $region48: #{conv_block_forward.1} parent=5 // pred_fallthru
      _
  $region6: #{conv_block_forward.1} parent=0 // loop_footer
    %s15 = sadd.s32 1, %s11
  $region7: #{conv_block_forward.1} parent=0 // loop_footer_branch
    %10 = sbr.rel target = $region3
  $region8: #{conv_block_forward.1} parent=0 // loop_exit
    _

</llo_original>
